<compile_context>
chip_gen: v7x
topology: tpu7x:2x2x1
jax: 0.10.0
libtpu: 0.0.40
codegen_flags: <defaults>
</compile_context>

<pallas_src>
import jax
import jax.numpy as jnp
from jax.experimental import pallas as pl
from jax.experimental.pallas import tpu as pltpu


# Sublane packing per dtype byte-width (f32/i32 -> 8, bf16 -> 16, int8/fp8 -> 32).
_SUBLANE_FOR_ITEMSIZE = {4: 8, 2: 16, 1: 32}
_TARGET_BLOCK_BYTES = 1 << 20   # ~1 MiB per block
_MAX_LANES = 4096               # lane-dense last dim, multiple of 128


def _identity_kernel(x_ref, o_ref):
    # Placeholder forward: pure pass-through of one (tile_r, lanes) block.
    o_ref[...] = x_ref[...]


def _pick_tile_rows(rows, lanes, itemsize, sub):
    """Rows per block: ~1 MiB, multiple of the packed-sublane height."""
    tile_r = max(sub, (_TARGET_BLOCK_BYTES // (lanes * itemsize)) // sub * sub)
    rows_aligned = pl.cdiv(rows, sub) * sub
    return min(tile_r, rows_aligned)


def _copy_2d(x2d, tile_r):
    """Tiled identity copy of a (rows, lanes) slab; rows % tile_r == 0."""
    rows, lanes = x2d.shape
    return pl.pallas_call(
        _identity_kernel,
        out_shape=jax.ShapeDtypeStruct((rows, lanes), x2d.dtype),
        grid=(rows // tile_r,),
        in_specs=[pl.BlockSpec((tile_r, lanes), lambda i: (i, 0))],
        out_specs=pl.BlockSpec((tile_r, lanes), lambda i: (i, 0)),
        input_output_aliases={0: 0},
        compiler_params=pltpu.CompilerParams(
            dimension_semantics=("parallel",),
        ),
    )(x2d)


@jax.jit
def _forward_identity(x):
    """Identity 'forward' implemented as a tiled, pipelined Pallas TPU copy."""
    if x.size == 0:
        return x

    itemsize = jnp.dtype(x.dtype).itemsize
    sub = _SUBLANE_FOR_ITEMSIZE.get(itemsize, 8)
    n = x.size

    # ---- Fast path: already lane/sublane aligned -> free reshape, no pad. ----
    if (x.ndim >= 2
            and x.shape[-1] % 128 == 0
            and (n // x.shape[-1]) % sub == 0
            and x.shape[-1] * sub * itemsize <= _TARGET_BLOCK_BYTES):
        lanes = x.shape[-1]
        rows = n // lanes
        tile_r = _pick_tile_rows(rows, lanes, itemsize, sub)
        if rows % tile_r == 0:
            out2d = _copy_2d(x.reshape(rows, lanes), tile_r)
            return out2d.reshape(x.shape)
        # Ragged row count: fall through to the general path.

    # ---- General path: flatten to a wide lane-dense slab, pad if needed. ----
    lanes = 128
    for cand in (_MAX_LANES, 2048, 1024, 512, 256):
        if n >= cand * sub:
            lanes = cand
            break
    rows = pl.cdiv(n, lanes)
    tile_r = _pick_tile_rows(rows, lanes, itemsize, sub)
    rows_padded = pl.cdiv(rows, tile_r) * tile_r
    padded = rows_padded * lanes

    x_flat = jnp.ravel(x)
    if padded != n:
        x_flat = jnp.pad(x_flat, (0, padded - n))
    out2d = _copy_2d(x_flat.reshape(rows_padded, lanes), tile_r)
    out_flat = out2d.reshape(-1)
    if padded != n:
        out_flat = out_flat[:n]
    return out_flat.reshape(x.shape)


class BaseModel:
    """JAX/Pallas port of the PyTorch BaseModel (abstract base class)."""

    def __init__(self):
        self.train_loss_per_iteration = []
        self.val_loss_per_iteration = []
        self.train_accuracy_per_iteration = []
        self.val_accuracy_per_iteration = []

    def forward(self, x):
        # Source module raises NotImplementedError; keep that semantic.
        raise NotImplementedError("Forward method not implemented.")

    def forward_identity(self, x):
        # Runnable Pallas placeholder for subclass forward passes.
        return _forward_identity(x)

    def track_metrics_iteration(self, train_loss=None, val_loss=None,
                                train_accuracy=None, val_accuracy=None):
        if train_loss is not None:
            self.train_loss_per_iteration.append(train_loss)
        if val_loss is not None:
            self.val_loss_per_iteration.append(val_loss)
        if train_accuracy is not None:
            self.train_accuracy_per_iteration.append(train_accuracy)
        if val_accuracy is not None:
            self.val_accuracy_per_iteration.append(val_accuracy)

    def get_metrics_per_iteration(self):
        return {
            "train_loss": self.train_loss_per_iteration,
            "val_loss": self.val_loss_per_iteration,
            "train_accuracy": self.train_accuracy_per_iteration,
            "val_accuracy": self.val_accuracy_per_iteration,
        }


if __name__ == "__main__":
    key = jax.random.PRNGKey(0)
    k0, k1 = jax.random.split(key)

    model = BaseModel()

    # Small NCHW-style input consistent with typical subclass usage.
    x = jax.random.normal(k0, (2, 4, 16, 16), dtype=jnp.float32)

    # Verify base-class forward semantics (NotImplementedError).
    try:
        model.forward(x)
        raise RuntimeError("expected NotImplementedError")
    except NotImplementedError:
        pass

    # General path (last dim not lane-aligned -> flattened lane-dense slab).
    out = jax.block_until_ready(model.forward_identity(x))
    assert out.shape == x.shape and out.dtype == x.dtype
    assert bool(jnp.allclose(out, x))

    # Fast path (lane/sublane aligned -> no pad/slice, tiled copy directly).
    x_aligned = jax.random.normal(k1, (16, 256), dtype=jnp.float32)
    out_aligned = jax.block_until_ready(model.forward_identity(x_aligned))
    assert out_aligned.shape == x_aligned.shape
    assert bool(jnp.allclose(out_aligned, x_aligned))

    # Packed-dtype path (bf16 -> 16-row sublane alignment).
    x_bf16 = jax.random.normal(k1, (32, 128), dtype=jnp.bfloat16)
    out_bf16 = jax.block_until_ready(model.forward_identity(x_bf16))
    assert out_bf16.dtype == jnp.bfloat16
    assert bool(jnp.all(out_bf16 == x_bf16))

    # Exercise the metrics tracking API.
    model.track_metrics_iteration(train_loss=0.5, train_accuracy=0.9)
    model.track_metrics_iteration(val_loss=0.4, val_accuracy=0.92)
    m = model.get_metrics_per_iteration()
    assert m["train_loss"] == [0.5] and m["val_accuracy"] == [0.92]
    assert m["val_loss"] == [0.4] and m["train_accuracy"] == [0.9]

    print("KERNEL_OK")
</pallas_src>

<mosaic_0001>
module attributes {stable_mosaic.version = 11 : i64} {
  func.func @_identity_kernel(%arg0: i32, %arg1: memref<8x256xf32, #tpu.memory_space<vmem>>, %arg2: memref<8x256xf32, #tpu.memory_space<vmem>>) attributes {dimension_semantics = [#tpu.dimension_semantics<parallel>], iteration_bounds = array<i64: 1>, scalar_prefetch = 0 : i64, scratch_operands = 0 : i64, tpu.core_type = #tpu.core_type<tc>, window_params = [{transform_indices = @transform_0, window_bounds = array<i64: 8, 256>}, {transform_indices = @transform_1, window_bounds = array<i64: 8, 256>}]} {
    %c0 = arith.constant 0 : index
    %c0_0 = arith.constant 0 : index
    %0 = vector.load %arg1[%c0, %c0_0] : memref<8x256xf32, #tpu.memory_space<vmem>>, vector<8x256xf32>
    %c0_1 = arith.constant 0 : index
    %c0_2 = arith.constant 0 : index
    %1 = vector.load %arg2[%c0_1, %c0_2] : memref<8x256xf32, #tpu.memory_space<vmem>>, vector<8x256xf32>
    tpu.vector_store %arg2[%c0_1, %c0_2], %0 {strides = array<i32>} : memref<8x256xf32, #tpu.memory_space<vmem>>, vector<8x256xf32>,
    return
  }
  func.func @transform_0(%arg0: i32) -> (i32, i32) {
    %c0_i32 = arith.constant 0 : i32
    %c0_i32_0 = arith.constant 0 : i32
    return %arg0, %c0_i32 : i32, i32
  }
  func.func @transform_1(%arg0: i32) -> (i32, i32) {
    %c0_i32 = arith.constant 0 : i32
    %c0_i32_0 = arith.constant 0 : i32
    return %arg0, %c0_i32 : i32, i32
  }
}

</mosaic_0001>

<llo_original>
// kernel: _forward_identity.1
$region0: #{_forward_identity.1}
  #allocation0 [shape = 'u32[]', space=smem, size = 0x4, offset = 0x4, fixed_abs, tag = 'smem constant byte address 0x4 - core index']
  #allocation1 [shape = 'u32[144,128]{1,0:T(1,128)}', space=vmem, size = 0x12000, scoped, tag = 'internal scratch']
  %s0 = inlined_call_operand.vmem [shape: f32[8,256], index: 0, kind: input, shape index: {}, may-alias: {0,1}]
  %s1 = inlined_call_operand.vmem [shape: f32[8,256], index: 1, kind: output, shape index: {}, may-alias: {0,1}]
  %s2 = sld [smem:[#allocation0]]
  $region14: #{_forward_identity.1} parent=0
    _
  %s4 = ssub.s32 1, %s2
  %s5 = scalar_select 0, %s4, %s2
  // Predicated region
  $region2: #{_forward_identity.1} parent=0 // pred_check
    _
  $region3: #{_forward_identity.1} parent=0 // pred_check_branch
    %7 = sbr.rel (0) target = $region5
  $region4: #{_forward_identity.1} parent=0 // pred_region
    _
  $region5: #{_forward_identity.1} parent=0 // pred_fallthru
    _
  %v8 = vld [vmem:[%s0] sm:$0xff]
  %v9 = vld [vmem:[%s0 + $0x8] sm:$0xff]
  %10 = vst [vmem:[%s1] sm:$0xff] %v8
  %11 = vst [vmem:[%s1 + $0x8] sm:$0xff] %v9
  // Predicated region
  $region6: #{_forward_identity.1} parent=0 // pred_check
    _
  $region7: #{_forward_identity.1} parent=0 // pred_check_branch
    %13 = sbr.rel (0) target = $region9
  $region8: #{_forward_identity.1} parent=0 // pred_region
    _
  $region9: #{_forward_identity.1} parent=0 // pred_fallthru
    _
  // Predicated region
  $region10: #{_forward_identity.1} parent=0 // pred_check
    _
  $region11: #{_forward_identity.1} parent=0 // pred_check_branch
    %15 = sbr.rel (0) target = $region13
  $region12: #{_forward_identity.1} parent=0 // pred_region
    _
  $region13: #{_forward_identity.1} parent=0 // pred_fallthru
    _

</llo_original>
